<compile_context>
chip_gen: v5e
topology: v5e:2x2
jax: 0.10.0
libtpu: 0.0.40
codegen_flags: <defaults>
</compile_context>

<pallas_src>
import inspect

import numpy as np
import jax
import jax.numpy as jnp
from jax.experimental import pallas as pl
from jax.experimental.pallas import tpu as pltpu


# Guard for older jax builds without BlockSpec(pipeline_mode=...).
_HAS_PIPELINE_MODE = "pipeline_mode" in inspect.signature(pl.BlockSpec).parameters


# ---------------------------------------------------------------------------
# Pallas kernel: one MXU matmul + f32 bias add per (row-tile, lane-tile) block.
# ---------------------------------------------------------------------------
def _lcn_kernel(w_ref, b_ref, x_ref, o_ref):
    # w_ref: (TM, Kt*C*V) bf16    x_ref: (Kt*C*V, TL) bf16
    # b_ref: (TM, 1)      f32     o_ref: (TM, TL)     f32
    acc = jnp.dot(w_ref[...], x_ref[...], preferred_element_type=jnp.float32)
    o_ref[...] = (acc + b_ref[...]).astype(o_ref.dtype)


def _pick_tile(dim, pref, unit):
    """Largest tile <= pref that divides `dim` and is a multiple of `unit`;
    falls back to the full dimension (always a legal block shape)."""
    if dim <= pref or dim % unit != 0:
        return dim
    t = pref - (pref % unit)
    while t >= unit:
        if dim % t == 0:
            return t
        t -= unit
    return dim


def _in_spec(shape, index_map, grid_invariant):
    # Grid-invariant operands don't benefit from double buffering; single-buffer
    # them to halve their VMEM footprint (matters for the weight slab on v7x).
    if grid_invariant and _HAS_PIPELINE_MODE:
        return pl.BlockSpec(shape, index_map, pipeline_mode=pl.Buffered(1))
    return pl.BlockSpec(shape, index_map)


def lcn_forward(x, w_fold, b_fold, *, kt, stride, pad, out_ch, w_nodes):
    """x: (N, C, V, T) f32; w_fold: (O*W, Kt*C*V); b_fold: (O*W, 1).
    Returns PyTorch-layout (N, O, W, T_out) f32."""
    n, c, v, t = x.shape
    t_out = (t + 2 * pad - kt) // stride + 1
    cv = c * v
    k_dim = kt * cv
    m_dim = w_fold.shape[0]
    l_dim = n * t_out
    assert m_dim == out_ch * w_nodes

    # Host-side glue: zero-pad time, flatten (C, V), im2col the Kt temporal taps.
    # This also resolves time_stride outside the kernel -> the hot loop is pure MXU.
    xp = jnp.pad(x, ((0, 0), (0, 0), (0, 0), (pad, pad))).reshape(n, cv, t + 2 * pad)
    taps = [xp[:, :, dt: dt + stride * (t_out - 1) + 1: stride] for dt in range(kt)]
    x_cols = jnp.stack(taps, axis=0)                              # (Kt, N, C*V, T_out)
    x_cols = x_cols.transpose(0, 2, 1, 3).reshape(k_dim, l_dim)   # (Kt*C*V, N*T_out)

    w_bf = w_fold.astype(jnp.bfloat16)
    x_bf = x_cols.astype(jnp.bfloat16)
    b_f32 = b_fold.astype(jnp.float32)

    tm = _pick_tile(m_dim, 512, 8)      # output rows (O*W): sublane axis
    tl = _pick_tile(l_dim, 1024, 128)   # output lanes (N*T_out): lane axis
    gm, gl = m_dim // tm, l_dim // tl

    # Explicit VMEM budget (generous headroom, capped well below v7x's 64 MiB).
    buf_bytes = (tm * k_dim * 2 * (1 if gm == 1 else 2)      # weights (bf16)
                 + tm * 4 * (1 if gm == 1 else 2)            # bias (f32)
                 + k_dim * tl * 2 * (1 if gl == 1 else 2)    # im2col RHS (bf16)
                 + tm * tl * 4 * 2)                          # output (f32)
    vmem_limit = int(min(max(4 * buf_bytes, 16 << 20), 48 << 20))

    # TODO(synk): for configs where a single (tm, Kt*C*V) weight tile overflows
    # VMEM (very large V*C), add a reduction grid axis over K with an f32
    # accumulator scratch and pl.when init/finalize.
    out_flat = pl.pallas_call(
        _lcn_kernel,
        out_shape=jax.ShapeDtypeStruct((m_dim, l_dim), jnp.float32),
        grid=(gm, gl),
        in_specs=[
            _in_spec((tm, k_dim), lambda m, l: (m, 0), gm == 1),  # folded weights
            _in_spec((tm, 1), lambda m, l: (m, 0), gm == 1),      # folded bias
            _in_spec((k_dim, tl), lambda m, l: (0, l), gl == 1),  # im2col RHS
        ],
        out_specs=pl.BlockSpec((tm, tl), lambda m, l: (m, l)),
        compiler_params=pltpu.CompilerParams(
            dimension_semantics=("parallel", "parallel"),
            vmem_limit_bytes=vmem_limit,
        ),
    )(w_bf, b_f32, x_bf)

    # Rows are already in (o, w) order (down_A rows permuted on the host), so this
    # is only a batch-to-front move plus reshape, not an (O, W) channel transpose.
    return out_flat.reshape(out_ch, w_nodes, n, t_out).transpose(2, 0, 1, 3)


# ---------------------------------------------------------------------------
# Host-side parameter folding (exact; pure index bookkeeping + small matmuls).
# ---------------------------------------------------------------------------
def fold_lcn_params(weights, biases, receptive_field, down_A, *, out_ch, kt):
    """Embed the per-node convs into a dense weight, fold down_A and the bias in
    (exact by linearity), and permute rows to (o, w) order."""
    v = len(receptive_field)
    c = np.asarray(weights[0]).shape[1]
    o = out_ch

    # Dense per-tap embedding: rows (i*O + o), cols (c*V + vv).
    w_full = np.zeros((v, o, c, v, kt), np.float32)
    for i, nb in enumerate(receptive_field):
        wi = np.asarray(weights[i], np.float32)
        for kpos, vv in enumerate(nb):
            w_full[i, :, :, vv, :] = wi[:, :, kpos, :]
    w_mat = w_full.transpose(4, 0, 1, 2, 3).reshape(kt, v * o, c * v)  # (Kt, V*O, C*V)
    b_vec = np.stack([np.asarray(b, np.float32) for b in biases]).reshape(v * o, 1)

    down = (np.asarray(down_A, np.float32) if down_A is not None
            else np.eye(v, dtype=np.float32))
    w_nodes = down.shape[0]
    d_exp = np.kron(down, np.eye(o, dtype=np.float32))          # rows (w*O + o)
    perm = np.arange(w_nodes * o).reshape(w_nodes, o).T.reshape(-1)
    d_perm = d_exp[perm]                                        # rows (o*W + w)

    w_fold = np.concatenate([d_perm @ w_mat[dt] for dt in range(kt)], axis=1)
    b_fold = d_perm @ b_vec
    return jnp.asarray(w_fold), jnp.asarray(b_fold), w_nodes


def lcn_reference(x, weights, biases, receptive_field, down_A, kt, stride, pad):
    """Pure-JAX reference mirroring the PyTorch per-node conv loop."""
    n, c, v, t = x.shape
    t_out = (t + 2 * pad - kt) // stride + 1
    xp = jnp.pad(x, ((0, 0), (0, 0), (0, 0), (pad, pad)))
    outs = []
    for i in range(v):
        nb = receptive_field[i]
        xf = xp[:, :, nb, :]                        # (N, C, Ki, T_pad)
        w = weights[i]                              # (O, C, Ki, Kt)
        cols = []
        for to in range(t_out):
            seg = xf[:, :, :, to * stride: to * stride + kt]
            cols.append(jnp.einsum('nckd,ockd->no', seg, w))
        out_i = jnp.stack(cols, axis=-1) + biases[i][None, :, None]
        outs.append(out_i[:, :, None, :])
    out = jnp.concatenate(outs, axis=2)             # (N, O, V, T_out)
    if down_A is not None:
        out = jnp.einsum('wv,ncvt->ncwt', down_A, out)
    return out


if __name__ == "__main__":
    N, C, O, V, T = 2, 4, 8, 8, 16
    Kt, stride = 3, 1
    pad = Kt // 2
    W_nodes = 4

    # Adjacency: ring graph with self-loops (each node sees 3 neighbors).
    A = np.zeros((V, V), np.float32)
    for i in range(V):
        A[i, i] = 1.0
        A[i, (i + 1) % V] = 1.0
        A[i, (i - 1) % V] = 1.0
    receptive_field = [np.where(A[i] != 0)[0] for i in range(V)]

    key = jax.random.PRNGKey(0)
    key, kx = jax.random.split(key)
    x = jax.random.normal(kx, (N, C, V, T), jnp.float32)

    # Deterministic per-node conv parameters (same shapes nn.Conv2d would have).
    weights, biases = [], []
    for i in range(V):
        key, kw, kb = jax.random.split(key, 3)
        ki = len(receptive_field[i])
        weights.append(jax.random.normal(kw, (O, C, ki, Kt), jnp.float32) * 0.1)
        biases.append(jax.random.normal(kb, (O,), jnp.float32) * 0.1)

    key, kd = jax.random.split(key)
    down_A = jax.random.normal(kd, (W_nodes, V), jnp.float32)

    w_fold, b_fold, w_nodes = fold_lcn_params(
        weights, biases, receptive_field, np.asarray(down_A), out_ch=O, kt=Kt)

    out = lcn_forward(x, w_fold, b_fold,
                      kt=Kt, stride=stride, pad=pad, out_ch=O, w_nodes=w_nodes)
    out = jax.block_until_ready(out)

    ref = lcn_reference(x, weights, biases, receptive_field, down_A, Kt, stride, pad)
    T_out = (T + 2 * pad - Kt) // stride + 1
    assert out.shape == ref.shape == (N, O, W_nodes, T_out)
    # bf16 weights/activations with f32 accumulation -> loosened tolerance.
    np.testing.assert_allclose(np.asarray(out), np.asarray(ref), rtol=3e-2, atol=3e-2)
    print("KERNEL_OK")
</pallas_src>

<mosaic_0001>
module attributes {stable_mosaic.version = 11 : i64} {
  func.func @_lcn_kernel(%arg0: i32, %arg1: i32, %arg2: memref<32x96xbf16, #tpu.memory_space<vmem>>, %arg3: memref<32x1xf32, #tpu.memory_space<vmem>>, %arg4: memref<96x32xbf16, #tpu.memory_space<vmem>>, %arg5: memref<32x32xf32, #tpu.memory_space<vmem>>) attributes {dimension_semantics = [#tpu.dimension_semantics<parallel>, #tpu.dimension_semantics<parallel>], iteration_bounds = array<i64: 1, 1>, scalar_prefetch = 0 : i64, scratch_operands = 0 : i64, tpu.core_type = #tpu.core_type<tc>, window_params = [{pipeline_mode = #tpu.pipeline_mode<synchronous>, transform_indices = @transform_0, window_bounds = array<i64: 32, 96>}, {pipeline_mode = #tpu.pipeline_mode<synchronous>, transform_indices = @transform_1, window_bounds = array<i64: 32, 1>}, {pipeline_mode = #tpu.pipeline_mode<synchronous>, transform_indices = @transform_2, window_bounds = array<i64: 96, 32>}, {transform_indices = @transform_3, window_bounds = array<i64: 32, 32>}]} {
    %c0 = arith.constant 0 : index
    %c0_0 = arith.constant 0 : index
    %0 = vector.load %arg2[%c0, %c0_0] : memref<32x96xbf16, #tpu.memory_space<vmem>>, vector<32x96xbf16>
    %c0_1 = arith.constant 0 : index
    %c0_2 = arith.constant 0 : index
    %1 = vector.load %arg4[%c0_1, %c0_2] : memref<96x32xbf16, #tpu.memory_space<vmem>>, vector<96x32xbf16>
    %cst = arith.constant dense<0.000000e+00> : vector<32x32xf32>
    %2 = tpu.matmul %0, %1, %cst {dimension_numbers = #tpu.dot_dimension_numbers<[1], [0], [0], [1], [0, 0, 1, 1], [], []>} : vector<32x96xbf16>, vector<96x32xbf16>, vector<32x32xf32> -> vector<32x32xf32>
    %c0_3 = arith.constant 0 : index
    %c0_4 = arith.constant 0 : index
    %3 = vector.load %arg3[%c0_3, %c0_4] : memref<32x1xf32, #tpu.memory_space<vmem>>, vector<32x1xf32>
    %4 = vector.broadcast %3 : vector<32x1xf32> to vector<32x32xf32>
    %5 = arith.addf %2, %4 : vector<32x32xf32>
    %c0_5 = arith.constant 0 : index
    %c0_6 = arith.constant 0 : index
    %6 = vector.load %arg5[%c0_5, %c0_6] : memref<32x32xf32, #tpu.memory_space<vmem>>, vector<32x32xf32>
    tpu.vector_store %arg5[%c0_5, %c0_6], %5 {strides = array<i32>} : memref<32x32xf32, #tpu.memory_space<vmem>>, vector<32x32xf32>,
    return
  }
  func.func @transform_0(%arg0: i32, %arg1: i32) -> (i32, i32) {
    %c0_i32 = arith.constant 0 : i32
    %c0_i32_0 = arith.constant 0 : i32
    return %arg0, %c0_i32 : i32, i32
  }
  func.func @transform_1(%arg0: i32, %arg1: i32) -> (i32, i32) {
    %c0_i32 = arith.constant 0 : i32
    %c0_i32_0 = arith.constant 0 : i32
    return %arg0, %c0_i32 : i32, i32
  }
  func.func @transform_2(%arg0: i32, %arg1: i32) -> (i32, i32) {
    %c0_i32 = arith.constant 0 : i32
    %c0_i32_0 = arith.constant 0 : i32
    return %c0_i32, %arg1 : i32, i32
  }
  func.func @transform_3(%arg0: i32, %arg1: i32) -> (i32, i32) {
    %c0_i32 = arith.constant 0 : i32
    return %arg0, %arg1 : i32, i32
  }
}

</mosaic_0001>

<llo_original>
// kernel: tpu_custom_call.1
$region0: #{tpu_custom_call.1}
  #allocation0 [shape = 'u32[]', space=smem, size = 0x4, offset = 0x4, fixed_abs, tag = 'smem constant byte address 0x4 - core index']
  #allocation1 [shape = 'u32[72,128]{1,0:T(1,128)}', space=vmem, size = 0x9000, scoped, tag = 'internal scratch']
  %s0 = inlined_call_operand.vmem [shape: bf16[32,96], index: 0, kind: input, shape index: {}]
  %s1 = inlined_call_operand.vmem [shape: f32[32,1], index: 1, kind: input, shape index: {}]
  %s2 = inlined_call_operand.vmem [shape: bf16[96,32], index: 2, kind: input, shape index: {}]
  %s3 = inlined_call_operand.hbm [shape: f32[32,32], index: 3, kind: output, shape index: {}]
  %s4 = sld [smem:[#allocation0]]
  $region22: #{tpu_custom_call.1} parent=0
    _
  %s6 = ssub.s32 1, %s4
  %s7 = scalar_select 0, %s6, %s4
  $region1: #{tpu_custom_call.1} parent=0
    #allocation2 [shape = 'u8[16384]{0}', space=vmem, size = 0x4000, scoped, tag = 'output window, operand 0, single buffered']
    #allocation3 [shape = 's32[1]{0}', space=sflag, size = 0x4, scoped, tag = 'scoped memory for tpu_custom_call.1']
    %8 = vsyncpa [#allocation3], 0
    // Predicated region
    $region2: #{tpu_custom_call.1} parent=1 // pred_check
      _
    $region3: #{tpu_custom_call.1} parent=1 // pred_check_branch
      %10 = sbr.rel (0) target = $region5
    $region4: #{tpu_custom_call.1} parent=1 // pred_region
      _
    $region5: #{tpu_custom_call.1} parent=1 // pred_fallthru
      _
    // Predicated region
    $region6: #{tpu_custom_call.1} parent=1 // pred_check
      _
    $region7: #{tpu_custom_call.1} parent=1 // pred_check_branch
      %12 = sbr.rel (0) target = $region9
    $region8: #{tpu_custom_call.1} parent=1 // pred_region
      _
    $region9: #{tpu_custom_call.1} parent=1 // pred_fallthru
      _
    // Predicated region
    $region10: #{tpu_custom_call.1} parent=1 // pred_check
      _
    $region11: #{tpu_custom_call.1} parent=1 // pred_check_branch
      %14 = sbr.rel (0) target = $region13
    $region12: #{tpu_custom_call.1} parent=1 // pred_region
      _
    $region13: #{tpu_custom_call.1} parent=1 // pred_fallthru
      _
    %v16 = vld [vmem:[%s0] sm:$0xf]
    %v17 = vld [vmem:[%s0 + $0x4] sm:$0xf]
    %v18 = vld [vmem:[%s0 + $0x8] sm:$0xf]
    %v19 = vld [vmem:[%s0 + $0xc] sm:$0xf]
    %v20 = vld [vmem:[%s2] sm:$0xf]
    %v21 = vld [vmem:[%s2 + $0x4] sm:$0xf]
    %v22 = vld [vmem:[%s2 + $0x8] sm:$0xf]
    %v23 = vld [vmem:[%s2 + $0xc] sm:$0xf]
    %v24 = vld [vmem:[%s2 + $0x10] sm:$0xf]
    %v25 = vld [vmem:[%s2 + $0x14] sm:$0xf]
    %v26 = vld [vmem:[%s2 + $0x18] sm:$0xf]
    %v27 = vld [vmem:[%s2 + $0x1c] sm:$0xf]
    %v28 = vld [vmem:[%s2 + $0x20] sm:$0xf]
    %v29 = vld [vmem:[%s2 + $0x24] sm:$0xf]
    %v30 = vld [vmem:[%s2 + $0x28] sm:$0xf]
    %v31 = vld [vmem:[%s2 + $0x2c] sm:$0xf]
    %v32 = vld [vmem:[%s1] sm:$0xff]
    %v33 = vld [vmem:[%s1 + $0x8] sm:$0xff]
    %v34 = vld [vmem:[%s1 + $0x10] sm:$0xff]
    %v35 = vld [vmem:[%s1 + $0x18] sm:$0xff]
    %37 = vset.pattern.permute.xlu0 0
    %38 = vperm.xlu0 %37, %v32
    %v39 = vpop.permute.xlu0 %38
    %42 = vset.pattern.permute.xlu0 0
    %43 = vperm.xlu0 %42, %v33
    %v44 = vpop.permute.xlu0 %43
    %47 = vset.pattern.permute.xlu0 0
    %48 = vperm.xlu0 %47, %v34
    %v49 = vpop.permute.xlu0 %48
    %52 = vset.pattern.permute.xlu0 0
    %53 = vperm.xlu0 %52, %v35
    %v54 = vpop.permute.xlu0 %53
    %v60 = vunpack.c.l.b16 %v16
    %v61 = vunpack.c.l.b16 %v17
    %v62 = vunpack.c.l.b16 %v18
    %v63 = vunpack.c.l.b16 %v19
    %v64 = vpack.c.b16 %v61, %v60
    %v65 = vpack.c.b16 %v63, %v62
    %v78 = vunpack.c.l.b16 %v20
    %v79 = vunpack.c.l.b16 %v21
    %v80 = vunpack.c.l.b16 %v22
    %v81 = vunpack.c.l.b16 %v23
    %v82 = vunpack.c.l.b16 %v24
    %v83 = vunpack.c.l.b16 %v25
    %v84 = vunpack.c.l.b16 %v26
    %v85 = vunpack.c.l.b16 %v27
    %v86 = vunpack.c.l.b16 %v28
    %v87 = vunpack.c.l.b16 %v29
    %v88 = vunpack.c.l.b16 %v30
    %v89 = vunpack.c.l.b16 %v31
    %v90 = vpack.c.b16 %v79, %v78
    %v91 = vpack.c.b16 %v81, %v80
    %v92 = vpack.c.b16 %v83, %v82
    %v93 = vpack.c.b16 %v85, %v84
    %v94 = vpack.c.b16 %v87, %v86
    %v95 = vpack.c.b16 %v89, %v88
    %vm102 = vcmask 785408
    %v104 = vsel %vm102, %v64, 0
    %v107 = vsel %vm102, %v65, 0
    %109 = vmatpush.bf16.msra.mxu0 0
    %110 = vmatpush.bf16.msra.mxu0 0
    %111 = vmatpush.bf16.msra.mxu0 %v95
    %112 = vmatpush.bf16.msra.mxu0 %v94
    %113 = vmatpush.bf16.msra.mxu0 %v93
    %114 = vmatpush.bf16.msra.mxu0 %v92
    %115 = vmatpush.bf16.msra.mxu0 %v91
    %116 = vmatpush.bf16.msra.mxu0 %v90
    %117 = vmatmul.bf16.gmra.mxu0 %v104
    %v118 = vpop.f32.mrf.mxu0
    %v119 = vadd.f32 %v39, %v118
    %v120 = vpop.f32.mrf.mxu0
    %v121 = vadd.f32 %v44, %v120
    %122 = vmatmul.bf16.gmra.mxu0 %v107
    %v123 = vpop.f32.mrf.mxu0
    %v124 = vadd.f32 %v49, %v123
    %v125 = vpop.f32.mrf.mxu0
    %v126 = vadd.f32 %v54, %v125
    %127 = vdwg.mxu0
    %vm128 = vcmask 261120
    %129 = vst.msk [vmem:[#allocation2] sm:$0xff] %vm128, %v119
    %130 = vst.msk [vmem:[#allocation2 + $0x8] sm:$0xff] %vm128, %v121
    %131 = vst.msk [vmem:[#allocation2 + $0x10] sm:$0xff] %vm128, %v124
    %132 = vst.msk [vmem:[#allocation2 + $0x18] sm:$0xff] %vm128, %v126
    // Predicated region
    $region14: #{tpu_custom_call.1} parent=1 // pred_check
      _
    $region15: #{tpu_custom_call.1} parent=1 // pred_check_branch
      %134 = sbr.rel (0) target = $region17
    $region16: #{tpu_custom_call.1} parent=1 // pred_region
      %136 = vsyncadd [#allocation3], 0
      %s137 = sshll.u32 [#allocation2], 4
      %s138 = int_to_ptr.vmem [resolvable:$true] %s137
      %s139 = sshll.u32 %s3, 4
      %s140 = int_to_ptr.hbm [resolvable:$true] %s139
      %145 = dma.vmem_to_hbm [thread:$0]  %s138, 512, %s140, [#allocation3], 128, 128, 8
    $region17: #{tpu_custom_call.1} parent=1 // pred_fallthru
      _
    // Predicated region
    $region18: #{tpu_custom_call.1} parent=1 // pred_check
      _
    $region19: #{tpu_custom_call.1} parent=1 // pred_check_branch
      %147 = sbr.rel (0) target = $region21
    $region20: #{tpu_custom_call.1} parent=1 // pred_region
      %149 = dma.done [#allocation3], 512
    $region21: #{tpu_custom_call.1} parent=1 // pred_fallthru
      _
    %150 = vsyncpa [#allocation3], 1

</llo_original>
